<compile_context>
chip_gen: v5e
topology: v5e:2x2
jax: 0.10.0
libtpu: 0.0.40
codegen_flags: <defaults>
</compile_context>

<pallas_src>
import functools

import jax
import jax.numpy as jnp
from jax import lax
from jax.experimental import pallas as pl
from jax.experimental.pallas import tpu as pltpu


# ---------------------------------------------------------------------------
# Kernel A: derived parameters  [w_flat | b] = theta @ [P_A | P_b] + [A_0 | b_0]
# ---------------------------------------------------------------------------
def _offset_params_kernel(theta_ref, proj_ref, base_ref, out_ref):
    # theta_ref: (1, d); proj_ref: (d, M); base_ref / out_ref: (1, M)
    out_ref[...] = (
        jnp.dot(theta_ref[...], proj_ref[...], preferred_element_type=jnp.float32)
        + base_ref[...]
    ).astype(out_ref.dtype)


def _make_offset_params(theta2d, proj, base):
    d, m = proj.shape
    return pl.pallas_call(
        _offset_params_kernel,
        out_shape=jax.ShapeDtypeStruct((1, m), jnp.float32),
        grid_spec=pltpu.PrefetchScalarGridSpec(
            num_scalar_prefetch=0,
            grid=(1,),  # ~1 KiB of work; tiling would be pure overhead
            in_specs=[
                pl.BlockSpec((1, d), lambda i: (0, 0)),
                pl.BlockSpec((d, m), lambda i: (0, 0)),
                pl.BlockSpec((1, m), lambda i: (0, 0)),
            ],
            out_specs=pl.BlockSpec((1, m), lambda i: (0, 0)),
        ),
        compiler_params=pltpu.CompilerParams(dimension_semantics=("arbitrary",)),
    )(theta2d, proj, base)


# ---------------------------------------------------------------------------
# Kernel B: direct conv2d, NHWC, one batch element per grid step
# ---------------------------------------------------------------------------
def _conv2d_kernel(x_ref, w_ref, b_ref, o_ref, *, kh, kw, h_out, w_out,
                   sh, sw, dh, dw, c_in, c_out):
    # x_ref: (H_pad, W_pad, Ci) ; w_ref: (kh*kw, Ci, Co)
    # b_ref: (1, Co)            ; o_ref: (Ho*Wo, Co)
    acc = jnp.zeros((h_out * w_out, c_out), jnp.float32)
    for ky in range(kh):          # static unroll over kernel taps
        for kx in range(kw):
            h0 = ky * dh
            w0 = kx * dw
            patch = x_ref[h0:h0 + (h_out - 1) * sh + 1,
                          w0:w0 + (w_out - 1) * sw + 1, :]
            if sh > 1 or sw > 1:
                # TODO(synk): strided taps use value-level strided slicing;
                # only stride=1 / dilation-covered paths are exercised below.
                patch = patch[::sh, ::sw, :]
            acc = acc + jnp.dot(patch.reshape(h_out * w_out, c_in),
                                w_ref[ky * kw + kx],
                                preferred_element_type=jnp.float32)
    acc = acc + b_ref[...]                      # (1, Co) broadcast over pixels
    o_ref[...] = acc.astype(o_ref.dtype)


def _conv2d_nhwc(x_pad, w_taps, bias, *, h_out, w_out, kh, kw, sh, sw, dh, dw):
    n, h_pad, w_pad, c_in = x_pad.shape
    c_out = w_taps.shape[-1]
    kern = functools.partial(
        _conv2d_kernel, kh=kh, kw=kw, h_out=h_out, w_out=w_out,
        sh=sh, sw=sw, dh=dh, dw=dw, c_in=c_in, c_out=c_out)
    return pl.pallas_call(
        kern,
        out_shape=jax.ShapeDtypeStruct((n, h_out * w_out, c_out), jnp.float32),
        grid_spec=pltpu.PrefetchScalarGridSpec(
            num_scalar_prefetch=0,
            grid=(n,),
            in_specs=[
                # one padded image per step (leading batch dim squeezed)
                pl.BlockSpec((None, h_pad, w_pad, c_in), lambda b: (b, 0, 0, 0)),
                # derived weights / bias: same tiny block every step (no re-DMA)
                pl.BlockSpec((kh * kw, c_in, c_out), lambda b: (0, 0, 0)),
                pl.BlockSpec((1, c_out), lambda b: (0, 0)),
            ],
            out_specs=pl.BlockSpec((None, h_out * w_out, c_out),
                                   lambda b: (b, 0, 0)),
        ),
        compiler_params=pltpu.CompilerParams(
            # batch elements are independent -> shard across v7x's 2 TCs
            dimension_semantics=("parallel",)),
    )(x_pad, w_taps, bias)


# ---------------------------------------------------------------------------
# Module wrapper: StochasticConv2dOffset.forward(input, theta)
# ---------------------------------------------------------------------------
def stochastic_conv2d_offset(x, theta, p_a, a_0, p_b, b_0,
                             stride=(1, 1), padding=(0, 0), dilation=(1, 1)):
    n, c_in, h, w = x.shape
    c_out, _, kh, kw = a_0.shape
    d = theta.shape[0]
    sh, sw = stride
    ph, pw = padding
    dh, dw = dilation
    h_out = (h + 2 * ph - dh * (kh - 1) - 1) // sh + 1
    w_out = (w + 2 * pw - dw * (kw - 1) - 1) // sw + 1
    m = kh * kw * c_in * c_out

    # --- one-time layout plumbing of the (tiny) parameter buffers ---
    # P_A: (Co,Ci,kh,kw,d) -> (d, kh*kw*Ci*Co); flat column order = (ky,kx,ci,co)
    # so the kernel-A result reshapes straight into (tap, Ci, Co).
    proj_w = jnp.transpose(p_a, (4, 2, 3, 1, 0)).reshape(d, m).astype(jnp.float32)
    base_w = jnp.transpose(a_0, (2, 3, 1, 0)).reshape(1, m).astype(jnp.float32)
    if p_b is not None:
        proj = jnp.concatenate([proj_w, jnp.transpose(p_b, (1, 0)).astype(jnp.float32)], axis=1)
        base = jnp.concatenate([base_w, b_0.reshape(1, c_out).astype(jnp.float32)], axis=1)
    else:
        proj, base = proj_w, base_w

    params = _make_offset_params(theta.reshape(1, d).astype(jnp.float32), proj, base)
    w_taps = params[0, :m].reshape(kh * kw, c_in, c_out)
    bias = params[:, m:] if p_b is not None else jnp.zeros((1, c_out), jnp.float32)

    # NCHW -> NHWC + spatial zero-pad: keeps the conv contraction (Ci) on the
    # lane dim of the patches and the output (pixels, Co) slab store-friendly.
    x_nhwc = jnp.transpose(x, (0, 2, 3, 1)).astype(jnp.float32)
    x_pad = jnp.pad(x_nhwc, ((0, 0), (ph, ph), (pw, pw), (0, 0)))

    out = _conv2d_nhwc(x_pad, w_taps, bias, h_out=h_out, w_out=w_out,
                       kh=kh, kw=kw, sh=sh, sw=sw, dh=dh, dw=dw)
    # (N, Ho*Wo, Co) -> (N, Co, Ho, Wo)   (PyTorch NCHW output)
    return jnp.transpose(out.reshape(n, h_out, w_out, c_out), (0, 3, 1, 2))


def dense_offset(key, d, shape):
    """JAX equivalent of models.layers.dense_offset (unit-norm over last dim)."""
    g = jax.random.normal(key, tuple(shape) + (d,), dtype=jnp.float32)
    nrm = jnp.sqrt(jnp.sum(g * g, axis=-1, keepdims=True))
    return g / jnp.maximum(nrm, 1e-12)


if __name__ == "__main__":
    key = jax.random.PRNGKey(0)
    k1, k2, k3, k4, k5, k6 = jax.random.split(key, 6)

    # Small shapes consistent with the module.
    d, c_in, c_out, ksz = 8, 4, 8, 3
    stride, padding, dilation = (1, 1), (1, 1), (1, 1)
    n, h, w = 2, 16, 16

    p_a = dense_offset(k1, d, (c_out, c_in, ksz, ksz))          # (Co,Ci,kh,kw,d)
    a_0 = 0.1 * jax.random.normal(k2, (c_out, c_in, ksz, ksz), jnp.float32)
    p_b = dense_offset(k3, d, (c_out,))                         # (Co,d)
    b_0 = 0.1 * jax.random.normal(k4, (c_out,), jnp.float32)
    theta = jax.random.normal(k5, (d,), jnp.float32)
    x = jax.random.normal(k6, (n, c_in, h, w), jnp.float32)

    y = stochastic_conv2d_offset(x, theta, p_a, a_0, p_b, b_0,
                                 stride=stride, padding=padding, dilation=dilation)
    y = jax.block_until_ready(y)

    # Reference: same math as the PyTorch forward, in plain XLA.
    w_ref = jnp.einsum('oihwd,d->oihw', p_a, theta) + a_0
    b_ref = p_b @ theta + b_0
    y_ref = lax.conv_general_dilated(
        x, w_ref, window_strides=stride,
        padding=[(padding[0], padding[0]), (padding[1], padding[1])],
        rhs_dilation=dilation,
        dimension_numbers=('NCHW', 'OIHW', 'NCHW'),
        precision=lax.Precision.HIGHEST,
    ) + b_ref[None, :, None, None]

    assert y.shape == y_ref.shape, (y.shape, y_ref.shape)
    err = float(jnp.max(jnp.abs(y - y_ref)))
    assert jnp.allclose(y, y_ref, atol=1e-2, rtol=1e-2), err
    print("KERNEL_OK")
</pallas_src>

<mosaic_0001>
module attributes {stable_mosaic.version = 11 : i64} {
  func.func @_offset_params_kernel(%arg0: i32, %arg1: memref<1x8xf32, #tpu.memory_space<vmem>>, %arg2: memref<8x296xf32, #tpu.memory_space<vmem>>, %arg3: memref<1x296xf32, #tpu.memory_space<vmem>>, %arg4: memref<1x296xf32, #tpu.memory_space<vmem>>) attributes {dimension_semantics = [#tpu.dimension_semantics<arbitrary>], iteration_bounds = array<i64: 1>, scalar_prefetch = 0 : i64, scratch_operands = 0 : i64, tpu.core_type = #tpu.core_type<tc>, window_params = [{pipeline_mode = #tpu.pipeline_mode<synchronous>, transform_indices = @transform_0, window_bounds = array<i64: 1, 8>}, {pipeline_mode = #tpu.pipeline_mode<synchronous>, transform_indices = @transform_1, window_bounds = array<i64: 8, 296>}, {pipeline_mode = #tpu.pipeline_mode<synchronous>, transform_indices = @transform_2, window_bounds = array<i64: 1, 296>}, {pipeline_mode = #tpu.pipeline_mode<synchronous>, transform_indices = @transform_3, window_bounds = array<i64: 1, 296>}]} {
    %c0 = arith.constant 0 : index
    %c0_0 = arith.constant 0 : index
    %0 = vector.load %arg1[%c0, %c0_0] : memref<1x8xf32, #tpu.memory_space<vmem>>, vector<1x8xf32>
    %c0_1 = arith.constant 0 : index
    %c0_2 = arith.constant 0 : index
    %1 = vector.load %arg2[%c0_1, %c0_2] : memref<8x296xf32, #tpu.memory_space<vmem>>, vector<8x296xf32>
    %cst = arith.constant dense<0.000000e+00> : vector<1x296xf32>
    %2 = tpu.matmul %0, %1, %cst {dimension_numbers = #tpu.dot_dimension_numbers<[1], [0], [0], [1], [0, 0, 1, 1], [], []>} : vector<1x8xf32>, vector<8x296xf32>, vector<1x296xf32> -> vector<1x296xf32>
    %c0_3 = arith.constant 0 : index
    %c0_4 = arith.constant 0 : index
    %3 = vector.load %arg3[%c0_3, %c0_4] : memref<1x296xf32, #tpu.memory_space<vmem>>, vector<1x296xf32>
    %4 = arith.addf %2, %3 : vector<1x296xf32>
    %c0_5 = arith.constant 0 : index
    %c0_6 = arith.constant 0 : index
    %5 = vector.load %arg4[%c0_5, %c0_6] : memref<1x296xf32, #tpu.memory_space<vmem>>, vector<1x296xf32>
    tpu.vector_store %arg4[%c0_5, %c0_6], %4 {strides = array<i32>} : memref<1x296xf32, #tpu.memory_space<vmem>>, vector<1x296xf32>,
    return
  }
  func.func @transform_0(%arg0: i32) -> (i32, i32) {
    %c0_i32 = arith.constant 0 : i32
    %c0_i32_0 = arith.constant 0 : i32
    %c0_i32_1 = arith.constant 0 : i32
    return %c0_i32, %c0_i32_0 : i32, i32
  }
  func.func @transform_1(%arg0: i32) -> (i32, i32) {
    %c0_i32 = arith.constant 0 : i32
    %c0_i32_0 = arith.constant 0 : i32
    %c0_i32_1 = arith.constant 0 : i32
    return %c0_i32, %c0_i32_0 : i32, i32
  }
  func.func @transform_2(%arg0: i32) -> (i32, i32) {
    %c0_i32 = arith.constant 0 : i32
    %c0_i32_0 = arith.constant 0 : i32
    %c0_i32_1 = arith.constant 0 : i32
    return %c0_i32, %c0_i32_0 : i32, i32
  }
  func.func @transform_3(%arg0: i32) -> (i32, i32) {
    %c0_i32 = arith.constant 0 : i32
    %c0_i32_0 = arith.constant 0 : i32
    %c0_i32_1 = arith.constant 0 : i32
    return %c0_i32, %c0_i32_0 : i32, i32
  }
}

</mosaic_0001>

<llo_original>
// kernel: tpu_custom_call.1
$region0: #{tpu_custom_call.1}
  #allocation0 [shape = 'u32[]', space=smem, size = 0x4, offset = 0x4, fixed_abs, tag = 'smem constant byte address 0x4 - core index']
  #allocation1 [shape = 'u32[72,128]{1,0:T(1,128)}', space=vmem, size = 0x9000, scoped, tag = 'internal scratch']
  %s0 = inlined_call_operand.hbm [shape: f32[1,8], index: 0, kind: input, shape index: {}]
  %s1 = inlined_call_operand.hbm [shape: f32[8,296], index: 1, kind: input, shape index: {}]
  %s2 = inlined_call_operand.hbm [shape: f32[1,296], index: 2, kind: input, shape index: {}]
  %s3 = inlined_call_operand.hbm [shape: f32[1,296], index: 3, kind: output, shape index: {}]
  %s4 = sld [smem:[#allocation0]]
  $region34: #{tpu_custom_call.1} parent=0
    _
  %s6 = ssub.s32 1, %s4
  %s7 = scalar_select 0, %s6, %s4
  $region1: #{tpu_custom_call.1} parent=0
    #allocation2 [shape = 'u8[512]{0}', space=vmem, size = 0x400, scoped, tag = 'input window, operand 0, single buffered']
    #allocation3 [shape = 's32[1]{0}', space=sflag, size = 0x4, scoped, tag = 'scoped memory for tpu_custom_call.1']
    #allocation4 [shape = 's32[1]{0}', space=sflag, size = 0x4, scoped, tag = 'scoped memory for tpu_custom_call.1']
    #allocation5 [shape = 'u8[12288]{0}', space=vmem, size = 0x3000, scoped, tag = 'input window, operand 1, single buffered']
    #allocation6 [shape = 's32[1]{0}', space=sflag, size = 0x4, scoped, tag = 'scoped memory for tpu_custom_call.1']
    #allocation7 [shape = 'u8[1536]{0}', space=vmem, size = 0x800, scoped, tag = 'input window, operand 2, single buffered']
    #allocation8 [shape = 'u8[1536]{0}', space=vmem, size = 0x800, scoped, tag = 'output window, operand 0, single buffered']
    %8 = vsyncpa [#allocation3], 0
    %9 = vsyncpa [#allocation6], 0
    %10 = vsyncpa [#allocation4], 0
    // Predicated region
    $region2: #{tpu_custom_call.1} parent=1 // pred_check
      _
    $region3: #{tpu_custom_call.1} parent=1 // pred_check_branch
      %12 = sbr.rel (0) target = $region5
    $region4: #{tpu_custom_call.1} parent=1 // pred_region
      %14 = vsyncadd [#allocation3], 0
      %s16 = sshll.u32 %s0, 4
      %s17 = int_to_ptr.hbm [resolvable:$true] %s16
      %s18 = sshll.u32 [#allocation2], 4
      %s19 = int_to_ptr.vmem [resolvable:$true] %s18
      %21 = dma.hbm_to_vmem [thread:$0]  %s17, 16, %s19, [#allocation3]
    $region5: #{tpu_custom_call.1} parent=1 // pred_fallthru
      _
    // Predicated region
    $region6: #{tpu_custom_call.1} parent=1 // pred_check
      _
    $region7: #{tpu_custom_call.1} parent=1 // pred_check_branch
      %23 = sbr.rel (0) target = $region9
    $region8: #{tpu_custom_call.1} parent=1 // pred_region
      %25 = vsyncadd [#allocation6], 0
      %s27 = sshll.u32 %s1, 4
      %s28 = int_to_ptr.hbm [resolvable:$true] %s27
      %s29 = sshll.u32 [#allocation5], 4
      %s30 = int_to_ptr.vmem [resolvable:$true] %s29
      %32 = dma.hbm_to_vmem [thread:$0]  %s28, 384, %s30, [#allocation6]
    $region9: #{tpu_custom_call.1} parent=1 // pred_fallthru
      _
    // Predicated region
    $region10: #{tpu_custom_call.1} parent=1 // pred_check
      _
    $region11: #{tpu_custom_call.1} parent=1 // pred_check_branch
      %34 = sbr.rel (0) target = $region13
    $region12: #{tpu_custom_call.1} parent=1 // pred_region
      %36 = vsyncadd [#allocation6], 0
      %s38 = sshll.u32 %s2, 4
      %s39 = int_to_ptr.hbm [resolvable:$true] %s38
      %s40 = sshll.u32 [#allocation7], 4
      %s41 = int_to_ptr.vmem [resolvable:$true] %s40
      %43 = dma.hbm_to_vmem [thread:$0]  %s39, 48, %s41, [#allocation6]
    $region13: #{tpu_custom_call.1} parent=1 // pred_fallthru
      _
    // Predicated region
    $region14: #{tpu_custom_call.1} parent=1 // pred_check
      _
    $region15: #{tpu_custom_call.1} parent=1 // pred_check_branch
      %45 = sbr.rel (0) target = $region17
    $region16: #{tpu_custom_call.1} parent=1 // pred_region
      %47 = dma.done [#allocation3], 16
    $region17: #{tpu_custom_call.1} parent=1 // pred_fallthru
      _
    // Predicated region
    $region18: #{tpu_custom_call.1} parent=1 // pred_check
      _
    $region19: #{tpu_custom_call.1} parent=1 // pred_check_branch
      %49 = sbr.rel (0) target = $region21
    $region20: #{tpu_custom_call.1} parent=1 // pred_region
      %51 = dma.done [#allocation6], 384
    $region21: #{tpu_custom_call.1} parent=1 // pred_fallthru
      _
    // Predicated region
    $region22: #{tpu_custom_call.1} parent=1 // pred_check
      _
    $region23: #{tpu_custom_call.1} parent=1 // pred_check_branch
      %53 = sbr.rel (0) target = $region25
    $region24: #{tpu_custom_call.1} parent=1 // pred_region
      %55 = dma.done [#allocation6], 48
    $region25: #{tpu_custom_call.1} parent=1 // pred_fallthru
      _
    %v56 = vld [vmem:[#allocation2] sm:$0x1]
    %v57 = vld [vmem:[#allocation5] sm:$0xff]
    %v58 = vld [vmem:[#allocation5 + $0x8] sm:$0xff]
    %v59 = vld [vmem:[#allocation5 + $0x10] sm:$0xff]
    %v60 = vld [vmem:[#allocation7] sm:$0x7]
    %v62 = vperm.slane %v60, 0
    %v63 = vperm.slane %v60, 1
    %v64 = vperm.slane %v60, 2
    %vm68 = vcmask 64512
    %v70 = vsel %vm68, %v56, 0
    %72 = vmatpush.msra.mxu0 0.0
    %73 = vmatpush.msra.mxu0 0.0
    %74 = vmatpush.msra.mxu0 0.0
    %75 = vmatpush.msra.mxu0 0.0
    %76 = vmatpush.msra.mxu0 0.0
    %77 = vmatpush.msra.mxu0 0.0
    %78 = vmatpush.msra.mxu0 0.0
    %79 = vmatpush.msra.mxu0 0.0
    %80 = vmatpush.msra.mxu0 0.0
    %81 = vmatpush.msra.mxu0 0.0
    %82 = vmatpush.msra.mxu0 0.0
    %83 = vmatpush.msra.mxu0 0.0
    %84 = vmatpush.msra.mxu0 0.0
    %85 = vmatpush.msra.mxu0 0.0
    %86 = vmatpush.msra.mxu0 0.0
    %87 = vmatpush.msra.mxu0 %v57
    %88 = vmatmul.f32.gmra.mxu0 %v70
    %v89 = vpop.f32.mrf.mxu0
    %v90 = vadd.f32 %v62, %v89
    %91 = vdwg.mxu0
    %92 = vmatpush.msra.mxu0 0.0
    %93 = vmatpush.msra.mxu0 0.0
    %94 = vmatpush.msra.mxu0 0.0
    %95 = vmatpush.msra.mxu0 0.0
    %96 = vmatpush.msra.mxu0 0.0
    %97 = vmatpush.msra.mxu0 0.0
    %98 = vmatpush.msra.mxu0 0.0
    %99 = vmatpush.msra.mxu0 0.0
    %100 = vmatpush.msra.mxu0 0.0
    %101 = vmatpush.msra.mxu0 0.0
    %102 = vmatpush.msra.mxu0 0.0
    %103 = vmatpush.msra.mxu0 0.0
    %104 = vmatpush.msra.mxu0 0.0
    %105 = vmatpush.msra.mxu0 0.0
    %106 = vmatpush.msra.mxu0 0.0
    %107 = vmatpush.msra.mxu0 %v58
    %108 = vmatmul.f32.gmra.mxu0 %v70
    %v109 = vpop.f32.mrf.mxu0
    %v110 = vadd.f32 %v63, %v109
    %111 = vdwg.mxu0
    %112 = vmatpush.msra.mxu0 0.0
    %113 = vmatpush.msra.mxu0 0.0
    %114 = vmatpush.msra.mxu0 0.0
    %115 = vmatpush.msra.mxu0 0.0
    %116 = vmatpush.msra.mxu0 0.0
    %117 = vmatpush.msra.mxu0 0.0
    %118 = vmatpush.msra.mxu0 0.0
    %119 = vmatpush.msra.mxu0 0.0
    %120 = vmatpush.msra.mxu0 0.0
    %121 = vmatpush.msra.mxu0 0.0
    %122 = vmatpush.msra.mxu0 0.0
    %123 = vmatpush.msra.mxu0 0.0
    %124 = vmatpush.msra.mxu0 0.0
    %125 = vmatpush.msra.mxu0 0.0
    %126 = vmatpush.msra.mxu0 0.0
    %127 = vmatpush.msra.mxu0 %v59
    %128 = vmatmul.f32.gmra.mxu0 %v70
    %v129 = vpop.f32.mrf.mxu0
    %v130 = vadd.f32 %v64, %v129
    %131 = vdwg.mxu0
    %v135 = vrot.slane %v110, 7
    %v136 = vrot.slane %v130, 6
    %vm137 = vcmask 1040384
    %v138 = vsel %vm137, %v90, %v135
    %vm139 = vcmask 1041408
    %v140 = vsel %vm139, %v138, %v136
    %v142 = vlaneseq
    %vm143 = vcmp.ge.s32.totalorder %v142, 0
    %vm144 = vcmp.lt.s32.totalorder %v142, 296
    %vm145 = vmand %vm143, %vm144
    %146 = vst.msk [vmem:[#allocation8] sm:$0x7] %vm145, %v140
    // Predicated region
    $region26: #{tpu_custom_call.1} parent=1 // pred_check
      _
    $region27: #{tpu_custom_call.1} parent=1 // pred_check_branch
      %148 = sbr.rel (0) target = $region29
    $region28: #{tpu_custom_call.1} parent=1 // pred_region
      %150 = vsyncadd [#allocation4], 0
      %s152 = sshll.u32 [#allocation8], 4
      %s153 = int_to_ptr.vmem [resolvable:$true] %s152
      %s154 = sshll.u32 %s3, 4
      %s155 = int_to_ptr.hbm [resolvable:$true] %s154
      %157 = dma.vmem_to_hbm [thread:$0]  %s153, 48, %s155, [#allocation4]
    $region29: #{tpu_custom_call.1} parent=1 // pred_fallthru
      _
    // Predicated region
    $region30: #{tpu_custom_call.1} parent=1 // pred_check
      _
    $region31: #{tpu_custom_call.1} parent=1 // pred_check_branch
      %159 = sbr.rel (0) target = $region33
    $region32: #{tpu_custom_call.1} parent=1 // pred_region
      %161 = dma.done [#allocation4], 48
    $region33: #{tpu_custom_call.1} parent=1 // pred_fallthru
      _
    %162 = vsyncpa [#allocation3], 1
    %163 = vsyncpa [#allocation6], 1
    %164 = vsyncpa [#allocation4], 1

</llo_original>
